<compile_context>
chip_gen: v7x
topology: tpu7x:2x2x1
jax: 0.10.0
libtpu: 0.0.40
codegen_flags: <defaults>
</compile_context>

<pallas_src>
import functools

import jax
import jax.numpy as jnp
import numpy as np
from jax.experimental import pallas as pl
from jax.experimental.pallas import tpu as pltpu


def _round_up(x, n):
    return ((x + n - 1) // n) * n


def _snorm_so3_kernel(x_ref, gamma_ref, beta_ref, o_ref, *, eps, ln_eps):
    # x_ref: (D, L) -- repr dim on sublanes, independent rows on lanes (lane-dense).
    x = x_ref[...].astype(jnp.float32)

    # L2 norm over the repr dim (cheap sublane reduction), clamp_min(eps).
    sumsq = jnp.sum(x * x, axis=0, keepdims=True)            # (1, L)
    norm = jnp.maximum(jnp.sqrt(sumsq), eps)                 # (1, L)

    # phase = features / norm  -> one reciprocal per row + cheap vmuls (no per-element divide).
    inv_norm = pl.reciprocal(norm, approx=False)             # (1, L)
    phase = x * inv_norm                                     # (D, L)

    # LayerNorm over the repr dim applied to `norm` broadcast along it (as in the module).
    norm_b = jnp.broadcast_to(norm, x.shape)                 # (D, L), constant along D
    mean = jnp.mean(norm_b, axis=0, keepdims=True)           # (1, L)
    centered = norm_b - mean                                 # (D, L)
    var = jnp.mean(centered * centered, axis=0, keepdims=True)
    y = centered * jax.lax.rsqrt(var + ln_eps)
    y = y * gamma_ref[...].astype(jnp.float32) + beta_ref[...].astype(jnp.float32)

    # nonlin = ReLU, then re-apply the phase.
    o_ref[...] = (jnp.maximum(y, 0.0) * phase).astype(o_ref.dtype)


def snorm_so3(features, gamma, beta, *, eps=1e-12, ln_eps=1e-5, lane_tile=32 * 1024):
    """Pallas forward pass of SNormSO3 with ReLU nonlinearity and LayerNorm transform.

    features: [..., m, repr_dim] with repr_dim == m (the only shape-valid configuration of
    the original module).  gamma/beta: LayerNorm(m) affine parameters, shape (m,).
    """
    orig_shape = features.shape
    d = orig_shape[-1]
    x = features.reshape(-1, d)
    r = x.shape[0]

    # Lane tile: multiple of 128, capped at lane_tile (~640 KiB per (d, L) f32 input block).
    l = min(lane_tile, _round_up(r, 128))
    r_pad = _round_up(r, l)
    if r_pad != r:
        # Zero padding is safe: zero rows -> norm clamps to eps, phase == 0, output == 0.
        x = jnp.pad(x, ((0, r_pad - r), (0, 0)))

    x_t = x.T                                                # (d, r_pad): rows on the lane axis
    gamma_c = jnp.asarray(gamma, jnp.float32).reshape(d, 1)
    beta_c = jnp.asarray(beta, jnp.float32).reshape(d, 1)

    grid = (r_pad // l,)
    kernel = functools.partial(_snorm_so3_kernel, eps=eps, ln_eps=ln_eps)

    out_t = pl.pallas_call(
        kernel,
        out_shape=jax.ShapeDtypeStruct((d, r_pad), features.dtype),
        grid=grid,
        in_specs=[
            pl.BlockSpec((d, l), lambda i: (0, i)),          # features (lane-dense block)
            pl.BlockSpec((d, 1), lambda i: (0, 0)),          # LayerNorm weight (gamma)
            pl.BlockSpec((d, 1), lambda i: (0, 0)),          # LayerNorm bias  (beta)
        ],
        out_specs=pl.BlockSpec((d, l), lambda i: (0, i)),
        compiler_params=pltpu.CompilerParams(
            dimension_semantics=("parallel",),
        ),
    )(x_t, gamma_c, beta_c)

    out = out_t.T
    if r_pad != r:
        out = out[:r]
    return out.reshape(orig_shape)


def snorm_so3_reference(features, gamma, beta, *, eps=1e-12, ln_eps=1e-5):
    """Pure-JAX reference mirroring the PyTorch forward exactly."""
    norm = jnp.sqrt(jnp.sum(features * features, axis=-1, keepdims=True))
    norm = jnp.maximum(norm, eps)
    norm_exp = jnp.broadcast_to(norm, features.shape)
    phase = features / norm_exp
    mean = jnp.mean(norm_exp, axis=-1, keepdims=True)
    var = jnp.mean((norm_exp - mean) ** 2, axis=-1, keepdims=True)
    y = (norm_exp - mean) * jax.lax.rsqrt(var + ln_eps) * gamma + beta
    transformed = jnp.maximum(y, 0.0)
    return transformed * phase


if __name__ == "__main__":
    # Fiber with a single type d=2 and multiplicity m=5 -> repr dim 2d+1 = 5 == m, which is
    # the only configuration for which the original forward is shape-valid.
    B, N, m, repr_dim = 2, 8, 5, 5

    key = jax.random.PRNGKey(0)
    k_feat, k_gamma, k_beta = jax.random.split(key, 3)

    features = jax.random.normal(k_feat, (B, N, m, repr_dim), dtype=jnp.float32)

    # PyTorch default LayerNorm init is weight=1, bias=0; perturb so the output is non-trivial.
    gamma = 1.0 + 0.1 * jax.random.normal(k_gamma, (m,), dtype=jnp.float32)
    beta = 0.5 * jax.random.normal(k_beta, (m,), dtype=jnp.float32)

    out = jax.block_until_ready(snorm_so3(features, gamma, beta))
    ref = snorm_so3_reference(features, gamma, beta)

    # atol covers the rounding noise of the degenerate LayerNorm (input constant along the
    # normalized dim) amplified by rsqrt(ln_eps) ~= 316; see note at the top of the file.
    np.testing.assert_allclose(np.asarray(out), np.asarray(ref), rtol=0.0, atol=2e-3)

    # Sanity check against the exact-math closed form of the same forward:
    # LayerNorm of a constant vector is `beta`, so output == relu(beta) * phase.
    norm = jnp.maximum(jnp.sqrt(jnp.sum(features * features, axis=-1, keepdims=True)), 1e-12)
    exact = jnp.maximum(beta, 0.0) * (features / norm)
    np.testing.assert_allclose(np.asarray(out), np.asarray(exact), rtol=0.0, atol=2e-3)

    print("KERNEL_OK")
</pallas_src>

<mosaic_0001>
module attributes {stable_mosaic.version = 11 : i64} {
  func.func @_snorm_so3_kernel(%arg0: i32, %arg1: memref<5x128xf32, #tpu.memory_space<vmem>>, %arg2: memref<5x1xf32, #tpu.memory_space<vmem>>, %arg3: memref<5x1xf32, #tpu.memory_space<vmem>>, %arg4: memref<5x128xf32, #tpu.memory_space<vmem>>) attributes {dimension_semantics = [#tpu.dimension_semantics<parallel>], iteration_bounds = array<i64: 1>, scalar_prefetch = 0 : i64, scratch_operands = 0 : i64, tpu.core_type = #tpu.core_type<tc>, window_params = [{transform_indices = @transform_0, window_bounds = array<i64: 5, 128>}, {pipeline_mode = #tpu.pipeline_mode<synchronous>, transform_indices = @transform_1, window_bounds = array<i64: 5, 1>}, {pipeline_mode = #tpu.pipeline_mode<synchronous>, transform_indices = @transform_2, window_bounds = array<i64: 5, 1>}, {transform_indices = @transform_3, window_bounds = array<i64: 5, 128>}]} {
    %c0 = arith.constant 0 : index
    %c0_0 = arith.constant 0 : index
    %0 = vector.load %arg1[%c0, %c0_0] : memref<5x128xf32, #tpu.memory_space<vmem>>, vector<5x128xf32>
    %1 = arith.mulf %0, %0 : vector<5x128xf32>
    %cst = arith.constant dense<0.000000e+00> : vector<128xf32>
    %2 = vector.multi_reduction <add>, %1, %cst [0] : vector<5x128xf32> to vector<128xf32>
    %3 = vector.shape_cast %2 : vector<128xf32> to vector<1x128xf32>
    %4 = math.sqrt %3 : vector<1x128xf32>
    %cst_1 = arith.constant 9.99999996E-13 : f32
    %5 = vector.broadcast %cst_1 : f32 to vector<1x128xf32>
    %6 = arith.maximumf %4, %5 : vector<1x128xf32>
    %7 = tpu.reciprocal %6 : vector<1x128xf32> -> vector<1x128xf32>
    %8 = vector.broadcast %7 : vector<1x128xf32> to vector<5x128xf32>
    %9 = arith.mulf %0, %8 : vector<5x128xf32>
    %10 = vector.shape_cast %6 : vector<1x128xf32> to vector<1x128xf32>
    %11 = vector.broadcast %10 : vector<1x128xf32> to vector<5x128xf32>
    %cst_2 = arith.constant dense<0.000000e+00> : vector<128xf32>
    %12 = vector.multi_reduction <add>, %11, %cst_2 [0] : vector<5x128xf32> to vector<128xf32>
    %13 = vector.shape_cast %12 : vector<128xf32> to vector<1x128xf32>
    %cst_3 = arith.constant 5.000000e+00 : f32
    %14 = vector.broadcast %cst_3 : f32 to vector<1x128xf32>
    %15 = arith.divf %13, %14 : vector<1x128xf32>
    %16 = vector.broadcast %15 : vector<1x128xf32> to vector<5x128xf32>
    %17 = arith.subf %11, %16 : vector<5x128xf32>
    %18 = arith.mulf %17, %17 : vector<5x128xf32>
    %cst_4 = arith.constant dense<0.000000e+00> : vector<128xf32>
    %19 = vector.multi_reduction <add>, %18, %cst_4 [0] : vector<5x128xf32> to vector<128xf32>
    %20 = vector.shape_cast %19 : vector<128xf32> to vector<1x128xf32>
    %cst_5 = arith.constant 5.000000e+00 : f32
    %21 = vector.broadcast %cst_5 : f32 to vector<1x128xf32>
    %22 = arith.divf %20, %21 : vector<1x128xf32>
    %cst_6 = arith.constant 9.99999974E-6 : f32
    %23 = vector.broadcast %cst_6 : f32 to vector<1x128xf32>
    %24 = arith.addf %22, %23 : vector<1x128xf32>
    %25 = math.rsqrt %24 : vector<1x128xf32>
    %26 = vector.broadcast %25 : vector<1x128xf32> to vector<5x128xf32>
    %27 = arith.mulf %17, %26 : vector<5x128xf32>
    %c0_7 = arith.constant 0 : index
    %c0_8 = arith.constant 0 : index
    %28 = vector.load %arg2[%c0_7, %c0_8] : memref<5x1xf32, #tpu.memory_space<vmem>>, vector<5x1xf32>
    %29 = vector.broadcast %28 : vector<5x1xf32> to vector<5x128xf32>
    %30 = arith.mulf %27, %29 : vector<5x128xf32>
    %c0_9 = arith.constant 0 : index
    %c0_10 = arith.constant 0 : index
    %31 = vector.load %arg3[%c0_9, %c0_10] : memref<5x1xf32, #tpu.memory_space<vmem>>, vector<5x1xf32>
    %32 = vector.broadcast %31 : vector<5x1xf32> to vector<5x128xf32>
    %33 = arith.addf %30, %32 : vector<5x128xf32>
    %cst_11 = arith.constant 0.000000e+00 : f32
    %34 = vector.broadcast %cst_11 : f32 to vector<5x128xf32>
    %35 = arith.maximumf %33, %34 : vector<5x128xf32>
    %36 = arith.mulf %35, %9 : vector<5x128xf32>
    %c0_12 = arith.constant 0 : index
    %c0_13 = arith.constant 0 : index
    %37 = vector.load %arg4[%c0_12, %c0_13] : memref<5x128xf32, #tpu.memory_space<vmem>>, vector<5x128xf32>
    tpu.vector_store %arg4[%c0_12, %c0_13], %36 {strides = array<i32>} : memref<5x128xf32, #tpu.memory_space<vmem>>, vector<5x128xf32>,
    return
  }
  func.func @transform_0(%arg0: i32) -> (i32, i32) {
    %c0_i32 = arith.constant 0 : i32
    %c0_i32_0 = arith.constant 0 : i32
    return %c0_i32, %arg0 : i32, i32
  }
  func.func @transform_1(%arg0: i32) -> (i32, i32) {
    %c0_i32 = arith.constant 0 : i32
    %c0_i32_0 = arith.constant 0 : i32
    %c0_i32_1 = arith.constant 0 : i32
    return %c0_i32, %c0_i32_0 : i32, i32
  }
  func.func @transform_2(%arg0: i32) -> (i32, i32) {
    %c0_i32 = arith.constant 0 : i32
    %c0_i32_0 = arith.constant 0 : i32
    %c0_i32_1 = arith.constant 0 : i32
    return %c0_i32, %c0_i32_0 : i32, i32
  }
  func.func @transform_3(%arg0: i32) -> (i32, i32) {
    %c0_i32 = arith.constant 0 : i32
    %c0_i32_0 = arith.constant 0 : i32
    return %c0_i32, %arg0 : i32, i32
  }
}

</mosaic_0001>

<llo_original>
// kernel: tpu_custom_call.1
$region0: #{tpu_custom_call.1}
  #allocation0 [shape = 'u32[]', space=smem, size = 0x4, offset = 0x4, fixed_abs, tag = 'smem constant byte address 0x4 - core index']
  #allocation1 [shape = 'u32[144,128]{1,0:T(1,128)}', space=vmem, size = 0x12000, scoped, tag = 'internal scratch']
  %s0 = inlined_call_operand.vmem [shape: f32[5,128], index: 0, kind: input, shape index: {}]
  %s1 = inlined_call_operand.vmem [shape: f32[5,1], index: 1, kind: input, shape index: {}]
  %s2 = inlined_call_operand.vmem [shape: f32[5,1], index: 2, kind: input, shape index: {}]
  %s3 = inlined_call_operand.hbm [shape: f32[5,128], index: 3, kind: output, shape index: {}]
  %s4 = sld [smem:[#allocation0]]
  $region22: #{tpu_custom_call.1} parent=0
    _
  %s6 = ssub.s32 1, %s4
  %s7 = scalar_select 0, %s6, %s4
  $region1: #{tpu_custom_call.1} parent=0
    #allocation2 [shape = 'u8[4096]{0}', space=vmem, size = 0x1000, scoped, tag = 'output window, operand 0, single buffered']
    #allocation3 [shape = 's32[1]{0}', space=sflag, size = 0x4, scoped, tag = 'scoped memory for tpu_custom_call.1']
    %8 = vsyncpa [#allocation3], 0
    // Predicated region
    $region2: #{tpu_custom_call.1} parent=1 // pred_check
      _
    $region3: #{tpu_custom_call.1} parent=1 // pred_check_branch
      %10 = sbr.rel (0) target = $region5
    $region4: #{tpu_custom_call.1} parent=1 // pred_region
      _
    $region5: #{tpu_custom_call.1} parent=1 // pred_fallthru
      _
    // Predicated region
    $region6: #{tpu_custom_call.1} parent=1 // pred_check
      _
    $region7: #{tpu_custom_call.1} parent=1 // pred_check_branch
      %12 = sbr.rel (0) target = $region9
    $region8: #{tpu_custom_call.1} parent=1 // pred_region
      _
    $region9: #{tpu_custom_call.1} parent=1 // pred_fallthru
      _
    // Predicated region
    $region10: #{tpu_custom_call.1} parent=1 // pred_check
      _
    $region11: #{tpu_custom_call.1} parent=1 // pred_check_branch
      %14 = sbr.rel (0) target = $region13
    $region12: #{tpu_custom_call.1} parent=1 // pred_region
      _
    $region13: #{tpu_custom_call.1} parent=1 // pred_fallthru
      _
    %v15 = vld [vmem:[%s0] sm:$0x1f]
    %v16 = vmul.f32 %v15, %v15
    %vm17 = vcmask 1044480
    %v18 = vsel %vm17, %v16, 0.0
    %v19 = vrot.slane %v18, 4
    %v20 = vadd.f32 %v18, %v19
    %v21 = vrot.slane %v20, 2
    %v22 = vadd.f32 %v20, %v21
    %v23 = vrot.slane %v22, 1
    %v24 = vadd.f32 %v22, %v23
    %v25 = vrsqrt.pop %v24
    %v26 = vmul.f32 %v24, %v25
    %vm27 = vcmp.eq.f32.partialorder %v24, inf
    %v28 = vsel %vm27, %v24, %v26
    %vm29 = vcmp.eq.f32.partialorder %v24, 0.0
    %v30 = vand.u32 %v24, 2147483648
    %v31 = vsel %vm29, %v30, %v28
    %v32 = vmax.f32 %v31, 1e-12
    %v33 = vrcp.pop %v32
    %v34 = vmul.f32 %v15, %v33
    %v35 = vsel %vm17, %v32, 0.0
    %v36 = vrot.slane %v35, 4
    %v37 = vadd.f32 %v35, %v36
    %v38 = vrot.slane %v37, 2
    %v39 = vadd.f32 %v37, %v38
    %v40 = vrot.slane %v39, 1
    %v41 = vadd.f32 %v39, %v40
    %v42 = vrcp.pop 5.0
    %v43 = vmul.f32 %v41, %v42
    %v44 = vsub.f32 %v32, %v43
    %v45 = vmul.f32 %v44, %v44
    %v46 = vsel %vm17, %v45, 0.0
    %v47 = vrot.slane %v46, 4
    %v48 = vadd.f32 %v46, %v47
    %v49 = vrot.slane %v48, 2
    %v50 = vadd.f32 %v48, %v49
    %v51 = vrot.slane %v50, 1
    %v52 = vadd.f32 %v50, %v51
    %v53 = vmul.f32 %v52, %v42
    %v54 = vadd.f32 %v53, 1e-05
    %v55 = vrsqrt.pop %v54
    %v56 = vmul.f32 %v44, %v55
    %v57 = vld [vmem:[%s1] sm:$0x1f]
    %59 = vset.pattern.permute.xlu0 0
    %60 = vperm.xlu0 %59, %v57
    %v61 = vpop.permute.xlu0 %60
    %v63 = vmul.f32 %v56, %v61
    %v64 = vld [vmem:[%s2] sm:$0x1f]
    %66 = vset.pattern.permute.xlu0 0
    %67 = vperm.xlu0 %66, %v64
    %v68 = vpop.permute.xlu0 %67
    %v70 = vadd.f32 %v63, %v68
    %v71 = vmax.f32 %v70, 0.0
    %v72 = vmul.f32 %v71, %v34
    %73 = vst [vmem:[#allocation2] sm:$0x1f] %v72
    // Predicated region
    $region14: #{tpu_custom_call.1} parent=1 // pred_check
      _
    $region15: #{tpu_custom_call.1} parent=1 // pred_check_branch
      %75 = sbr.rel (0) target = $region17
    $region16: #{tpu_custom_call.1} parent=1 // pred_region
      %s77 = ssub.s32 128, 128
      %78 = vsyncadd [#allocation3], %s77
      %s80 = sshll.u32 [#allocation2], 4
      %s81 = int_to_ptr.vmem [resolvable:$true] %s80
      %83 = dma.vmem_to_hbm [thread:$0]  %s81, 128, %s3, [#allocation3]
    $region17: #{tpu_custom_call.1} parent=1 // pred_fallthru
      _
    // Predicated region
    $region18: #{tpu_custom_call.1} parent=1 // pred_check
      _
    $region19: #{tpu_custom_call.1} parent=1 // pred_check_branch
      %85 = sbr.rel (0) target = $region21
    $region20: #{tpu_custom_call.1} parent=1 // pred_region
      %86 = dma.done [#allocation3], 128
    $region21: #{tpu_custom_call.1} parent=1 // pred_fallthru
      _
    %87 = vsyncpa [#allocation3], 1

</llo_original>
